<compile_context>
chip_gen: v7x
topology: tpu7x:2x2x1
jax: 0.10.0
libtpu: 0.0.40
codegen_flags: <defaults>
</compile_context>

<pallas_src>
from functools import partial

import jax
import jax.numpy as jnp
from jax.experimental import pallas as pl
from jax.experimental.pallas import tpu as pltpu

_LANES = 128
# Per-block byte cap: 8 MiB blocks -> 2 in + 2 out double-buffers = 32 MiB,
# inside the explicit 48 MiB scoped-VMEM limit below (v5e/v6e have 128 MiB
# physical VMEM; v7x has 64 MiB per TensorCore, so 48 MiB scoped + Mosaic
# internal scratch still fits).
_BLOCK_BYTE_CAP = 8 * 1024 * 1024
# Never shrink blocks below ~512 KiB (already ~85% of measured HBM roofline).
_MIN_BLOCK_BYTES = 512 * 1024
# Aim for >= 4 grid steps (>= 2 per v7x TensorCore) so DMA in/out pipelines.
_TARGET_BLOCKS = 4
_VMEM_LIMIT_BYTES = 48 * 1024 * 1024


def _mish_kernel(x_ref, o_ref):
    x = x_ref[...].astype(jnp.float32)
    # tanh(softplus(x)) = t*(t+2) / (t*(t+2) + 2) = 1 - 2/den,  t = exp(x).
    # Clamping the exp argument at 20 keeps t*(t+2) finite (no inf/nan) and
    # saturates den so 1 - 2/den rounds to 1.0f, i.e. y == x for x > 20
    # (matches torch's softplus threshold behavior within f32).
    t = jnp.exp(jnp.minimum(x, 20.0))
    den = t * (t + 2.0) + 2.0
    r = pl.reciprocal(den, approx=True)      # EUP slot, nearly free
    r = r * (2.0 - den * r)                  # one Newton step (VALU) -> ~f32 accurate
    o_ref[...] = (x * (1.0 - 2.0 * r)).astype(o_ref.dtype)


def _mish_xla(x):
    # Plain-XLA path for the <128-element ragged tail (and degenerate sizes).
    xf = x.astype(jnp.float32)
    return (xf * jnp.tanh(jax.nn.softplus(xf))).astype(x.dtype)


@partial(jax.jit, static_argnames=("block_rows",))
def mish(x: jax.Array, *, block_rows: int | None = None) -> jax.Array:
    """Elementwise Mish. Layout-agnostic: flattened to a lane-dense (rows, 128) slab."""
    orig_shape = x.shape
    dtype = x.dtype
    total = x.size

    if total == 0:
        return x

    xf = x.reshape(-1)
    main = (total // _LANES) * _LANES      # 128-aligned prefix handled by the kernel
    tail = total - main                    # <128 ragged tail handled by plain XLA

    out_main = None
    if main:
        rows = main // _LANES
        x2d = xf[:main].reshape(rows, _LANES)

        # Dtype-aware sublane packing: 8 (f32), 16 (bf16), 32 (int8/fp8).
        itemsize = jnp.dtype(dtype).itemsize
        sub_mult = max(8, 32 // itemsize)

        # Row tiles derived from BYTE budgets so every dtype gets equally
        # large blocks in bytes.
        cap_rows = max(sub_mult,
                       (_BLOCK_BYTE_CAP // (_LANES * itemsize)) // sub_mult * sub_mult)
        min_rows = max(sub_mult,
                       (_MIN_BLOCK_BYTES // (_LANES * itemsize)) // sub_mult * sub_mult)
        # >= _TARGET_BLOCKS grid steps when the array is big enough that each
        # block stays >= _MIN_BLOCK_BYTES (keeps both v7x cores pipelined).
        quarter_rows = pl.cdiv(pl.cdiv(rows, _TARGET_BLOCKS), sub_mult) * sub_mult

        tile_rows = min(cap_rows, max(min_rows, quarter_rows))
        if block_rows is not None:
            tile_rows = min(tile_rows, max(sub_mult, (block_rows // sub_mult) * sub_mult))
        # Never use a block meaningfully larger than the (sublane-rounded) array.
        tile_rows = max(sub_mult, min(tile_rows, pl.cdiv(rows, sub_mult) * sub_mult))

        grid = (pl.cdiv(rows, tile_rows),)   # partial last block is masked by Pallas

        out2d = pl.pallas_call(
            _mish_kernel,
            out_shape=jax.ShapeDtypeStruct((rows, _LANES), dtype),
            grid_spec=pltpu.PrefetchScalarGridSpec(
                num_scalar_prefetch=0,
                grid=grid,
                in_specs=[pl.BlockSpec((tile_rows, _LANES), lambda i: (i, 0))],
                out_specs=pl.BlockSpec((tile_rows, _LANES), lambda i: (i, 0)),
            ),
            compiler_params=pltpu.CompilerParams(
                dimension_semantics=("parallel",),
                vmem_limit_bytes=_VMEM_LIMIT_BYTES,
            ),
        )(x2d)
        out_main = out2d.reshape(-1)

    if tail:
        out_tail = _mish_xla(xf[main:])
        if out_main is None:
            return out_tail.reshape(orig_shape)
        return jnp.concatenate([out_main, out_tail]).reshape(orig_shape)

    return out_main.reshape(orig_shape)


def mish_ref(x):
    return x * jnp.tanh(jax.nn.softplus(x))


if __name__ == "__main__":
    key = jax.random.PRNGKey(0)
    x = jax.random.normal(key, (2, 4, 16, 16), dtype=jnp.float32) * 3.0

    y = mish(x)
    jax.block_until_ready(y)

    y_ref = mish_ref(x)

    assert y.shape == x.shape and y.dtype == x.dtype
    assert jnp.allclose(y, y_ref, atol=1e-4, rtol=1e-4), "mismatch vs reference"

    print("KERNEL_OK")
</pallas_src>

<mosaic_0001>
module attributes {stable_mosaic.version = 11 : i64} {
  func.func @_mish_kernel(%arg0: i32, %arg1: memref<16x128xf32, #tpu.memory_space<vmem>>, %arg2: memref<16x128xf32, #tpu.memory_space<vmem>>) attributes {dimension_semantics = [#tpu.dimension_semantics<parallel>], iteration_bounds = array<i64: 1>, scalar_prefetch = 0 : i64, scratch_operands = 0 : i64, tpu.core_type = #tpu.core_type<tc>, window_params = [{transform_indices = @transform_0, window_bounds = array<i64: 16, 128>}, {transform_indices = @transform_1, window_bounds = array<i64: 16, 128>}]} {
    %c0 = arith.constant 0 : index
    %c0_0 = arith.constant 0 : index
    %0 = vector.load %arg1[%c0, %c0_0] : memref<16x128xf32, #tpu.memory_space<vmem>>, vector<16x128xf32>
    %cst = arith.constant 2.000000e+01 : f32
    %1 = vector.broadcast %cst : f32 to vector<16x128xf32>
    %2 = arith.minimumf %0, %1 : vector<16x128xf32>
    %3 = math.exp %2 : vector<16x128xf32>
    %cst_1 = arith.constant 2.000000e+00 : f32
    %4 = vector.broadcast %cst_1 : f32 to vector<16x128xf32>
    %5 = arith.addf %3, %4 : vector<16x128xf32>
    %6 = arith.mulf %3, %5 : vector<16x128xf32>
    %cst_2 = arith.constant 2.000000e+00 : f32
    %7 = vector.broadcast %cst_2 : f32 to vector<16x128xf32>
    %8 = arith.addf %6, %7 : vector<16x128xf32>
    %9 = tpu.reciprocal %8 {approx = true} : vector<16x128xf32> -> vector<16x128xf32>
    %10 = arith.mulf %8, %9 : vector<16x128xf32>
    %cst_3 = arith.constant 2.000000e+00 : f32
    %11 = vector.broadcast %cst_3 : f32 to vector<16x128xf32>
    %12 = arith.subf %11, %10 : vector<16x128xf32>
    %13 = arith.mulf %9, %12 : vector<16x128xf32>
    %cst_4 = arith.constant 2.000000e+00 : f32
    %14 = vector.broadcast %cst_4 : f32 to vector<16x128xf32>
    %15 = arith.mulf %14, %13 : vector<16x128xf32>
    %cst_5 = arith.constant 1.000000e+00 : f32
    %16 = vector.broadcast %cst_5 : f32 to vector<16x128xf32>
    %17 = arith.subf %16, %15 : vector<16x128xf32>
    %18 = arith.mulf %0, %17 : vector<16x128xf32>
    %c0_6 = arith.constant 0 : index
    %c0_7 = arith.constant 0 : index
    %19 = vector.load %arg2[%c0_6, %c0_7] : memref<16x128xf32, #tpu.memory_space<vmem>>, vector<16x128xf32>
    tpu.vector_store %arg2[%c0_6, %c0_7], %18 {strides = array<i32>} : memref<16x128xf32, #tpu.memory_space<vmem>>, vector<16x128xf32>,
    return
  }
  func.func @transform_0(%arg0: i32) -> (i32, i32) {
    %c0_i32 = arith.constant 0 : i32
    %c0_i32_0 = arith.constant 0 : i32
    return %arg0, %c0_i32 : i32, i32
  }
  func.func @transform_1(%arg0: i32) -> (i32, i32) {
    %c0_i32 = arith.constant 0 : i32
    %c0_i32_0 = arith.constant 0 : i32
    return %arg0, %c0_i32 : i32, i32
  }
}

</mosaic_0001>

<llo_original>
// kernel: mish.1
$region0: #{mish.1}
  #allocation0 [shape = 'u32[]', space=smem, size = 0x4, offset = 0x4, fixed_abs, tag = 'smem constant byte address 0x4 - core index']
  #allocation1 [shape = 'u32[144,128]{1,0:T(1,128)}', space=vmem, size = 0x12000, scoped, tag = 'internal scratch']
  %s0 = inlined_call_operand.vmem [shape: f32[16,128], index: 0, kind: input, shape index: {}]
  %s1 = inlined_call_operand.vmem [shape: f32[16,128], index: 1, kind: output, shape index: {}]
  %s2 = sld [smem:[#allocation0]]
  $region14: #{mish.1} parent=0
    _
  %s4 = ssub.s32 1, %s2
  %s5 = scalar_select 0, %s4, %s2
  // Predicated region
  $region2: #{mish.1} parent=0 // pred_check
    _
  $region3: #{mish.1} parent=0 // pred_check_branch
    %7 = sbr.rel (0) target = $region5
  $region4: #{mish.1} parent=0 // pred_region
    _
  $region5: #{mish.1} parent=0 // pred_fallthru
    _
  %v8 = vld [vmem:[%s0] sm:$0xff]
  %v9 = vld [vmem:[%s0 + $0x8] sm:$0xff]
  %v10 = vmin.f32 %v8, 20.0
  %v11 = vmin.f32 %v9, 20.0
  %v12 = vmul.f32 %v10, 1.442695
  %v13 = vpow.pop %v12
  %v14 = vmul.f32 %v11, 1.442695
  %v15 = vpow.pop %v14
  %v16 = vadd.f32 %v13, 2.0
  %v17 = vadd.f32 %v15, 2.0
  %v18 = vmul.f32 %v13, %v16
  %v19 = vmul.f32 %v15, %v17
  %v20 = vadd.f32 %v18, 2.0
  %v21 = vadd.f32 %v19, 2.0
  %v22 = vrcp.pop %v20
  %v23 = vrcp.pop %v21
  %v24 = vmul.f32 %v20, %v22
  %v25 = vmul.f32 %v21, %v23
  %v26 = vsub.f32 2.0, %v24
  %v27 = vsub.f32 2.0, %v25
  %v28 = vmul.f32 %v22, %v26
  %v29 = vmul.f32 %v23, %v27
  %v30 = vmul.f32 %v28, 2.0
  %v31 = vmul.f32 %v29, 2.0
  %v32 = vsub.f32 1.0, %v30
  %v33 = vsub.f32 1.0, %v31
  %v34 = vmul.f32 %v8, %v32
  %v35 = vmul.f32 %v9, %v33
  %36 = vst [vmem:[%s1] sm:$0xff] %v34
  %37 = vst [vmem:[%s1 + $0x8] sm:$0xff] %v35
  // Predicated region
  $region6: #{mish.1} parent=0 // pred_check
    _
  $region7: #{mish.1} parent=0 // pred_check_branch
    %39 = sbr.rel (0) target = $region9
  $region8: #{mish.1} parent=0 // pred_region
    _
  $region9: #{mish.1} parent=0 // pred_fallthru
    _
  // Predicated region
  $region10: #{mish.1} parent=0 // pred_check
    _
  $region11: #{mish.1} parent=0 // pred_check_branch
    %41 = sbr.rel (0) target = $region13
  $region12: #{mish.1} parent=0 // pred_region
    _
  $region13: #{mish.1} parent=0 // pred_fallthru
    _

</llo_original>
